<compile_context>
chip_gen: v6e
topology: v6e:2x2x1
jax: 0.10.0
libtpu: 0.0.40
codegen_flags: <defaults>
</compile_context>

<pallas_src>
import jax
import jax.numpy as jnp
import numpy as np
from functools import partial
from jax import lax
from jax.experimental import pallas as pl
from jax.experimental.pallas import tpu as pltpu


# ----------------------------------------------------------------------------
# Fused attention kernel: one batch element per grid step, all heads inside.
# ----------------------------------------------------------------------------
def _fused_attention_kernel(x_ref, wqkv_ref, wout_ref, bout_ref, o_ref,
                            *, heads, dim_head, scale):
    x = x_ref[0]                                   # (N, D)
    inner = heads * dim_head

    # --- QKV projection: single wide matmul on the MXU, f32 accumulate ------
    qkv = jnp.dot(x, wqkv_ref[...],
                  preferred_element_type=jnp.float32)        # (N, 3*inner)

    acc = None                                                # f32 (N, D)

    # --- per-head attention + distributed output projection -----------------
    # Static unroll over heads (heads is small); each head's projection can
    # overlap with the next head's attention work (ILP for the scheduler).
    for h in range(heads):
        q_lo = h * dim_head
        k_lo = inner + h * dim_head
        v_lo = 2 * inner + h * dim_head

        qh = qkv[:, q_lo:q_lo + dim_head] * scale             # (N, Dh), scale folded in
        kh = qkv[:, k_lo:k_lo + dim_head]                     # (N, Dh)
        vh = qkv[:, v_lo:v_lo + dim_head]                     # (N, Dh)

        # sim = qh @ kh^T : contract last dims of both operands -> no explicit
        # transpose on the XLU, straight to the MXU.
        sim = lax.dot_general(
            qh, kh,
            dimension_numbers=(((1,), (1,)), ((), ())),
            preferred_element_type=jnp.float32,
        )                                                     # (N, N)

        # Numerically-stable softmax over the last axis.
        sim_max = jnp.max(sim, axis=-1, keepdims=True)
        p = jnp.exp(sim - sim_max)                            # EUP
        denom = jnp.sum(p, axis=-1, keepdims=True)
        attn = p * pl.reciprocal(denom, approx=True)          # EUP reciprocal

        head_out = jnp.dot(attn, vh,
                           preferred_element_type=jnp.float32)  # (N, Dh)

        # Project this head straight into the (N, D) output accumulator:
        # sublane-aligned static slice of the resident W_out ref.
        proj = jnp.dot(head_out, wout_ref[q_lo:q_lo + dim_head, :],
                       preferred_element_type=jnp.float32)      # (N, D)
        acc = proj if acc is None else acc + proj

    # --- bias add + lane-dense full-block store ------------------------------
    y = acc + bout_ref[...].astype(jnp.float32)               # (N, D) + (1, D)
    o_ref[0] = y.astype(o_ref.dtype)


# ----------------------------------------------------------------------------
# Full module forward (single fused pallas_call)
# ----------------------------------------------------------------------------
def attention_forward(x, params, *, heads):
    """x: (B, N, D). params: w_qkv (D, 3*H*Dh), w_out (H*Dh, D), b_out (D,)."""
    B, N, D = x.shape
    w_qkv = params["w_qkv"]
    w_out = params["w_out"]
    b_out = params["b_out"].reshape(1, -1)
    inner_dim = w_qkv.shape[1] // 3
    dim_head = inner_dim // heads
    scale = dim_head ** (-0.5)

    kern = partial(_fused_attention_kernel,
                   heads=heads, dim_head=dim_head, scale=scale)

    return pl.pallas_call(
        kern,
        out_shape=jax.ShapeDtypeStruct((B, N, D), x.dtype),
        grid=(B,),
        in_specs=[
            # per-batch activation tile
            pl.BlockSpec((1, N, D), lambda b: (b, 0, 0)),
            # weights/bias: same block every step -> stay resident in VMEM
            pl.BlockSpec((D, 3 * inner_dim), lambda b: (0, 0)),
            pl.BlockSpec((inner_dim, D), lambda b: (0, 0)),
            pl.BlockSpec((1, D), lambda b: (0, 0)),
        ],
        out_specs=pl.BlockSpec((1, N, D), lambda b: (b, 0, 0)),
        compiler_params=pltpu.CompilerParams(
            dimension_semantics=("parallel",)),
    )(x, w_qkv, w_out, b_out)
    # TODO(synk): nn.Dropout(p=0.0) is the identity in eval / p=0 -> omitted.


# ----------------------------------------------------------------------------
# Pure-JAX reference (sanity check)
# ----------------------------------------------------------------------------
def attention_ref(x, params, *, heads):
    B, N, D = x.shape
    inner_dim = params["w_qkv"].shape[1] // 3
    dim_head = inner_dim // heads
    scale = dim_head ** (-0.5)
    qkv = x @ params["w_qkv"]
    q, k, v = jnp.split(qkv, 3, axis=-1)

    def to_heads(t):
        return jnp.transpose(t.reshape(B, N, heads, dim_head), (0, 2, 1, 3))

    q, k, v = map(to_heads, (q, k, v))
    sim = jnp.einsum("bhid,bhjd->bhij", q, k) * scale
    attn = jax.nn.softmax(sim, axis=-1)
    out = jnp.einsum("bhij,bhjd->bhid", attn, v)
    out = jnp.transpose(out, (0, 2, 1, 3)).reshape(B, N, inner_dim)
    return out @ params["w_out"] + params["b_out"]


if __name__ == "__main__":
    # Small shapes consistent with the module's forward: x is (B, N, D)
    B, N, D = 2, 8, 32
    heads, dim_head = 2, 16
    inner_dim = heads * dim_head

    key = jax.random.PRNGKey(0)
    kx, kqkv, kwo, kbo = jax.random.split(key, 4)

    x = jax.random.normal(kx, (B, N, D), dtype=jnp.float32)
    params = {
        # to_qkv: Linear(dim, inner_dim*3, bias=False) -> weight (D, 3*inner_dim)
        "w_qkv": jax.random.normal(kqkv, (D, 3 * inner_dim), dtype=jnp.float32) * 0.1,
        # to_out[0]: Linear(inner_dim, dim) -> weight (inner_dim, D), bias (D,)
        "w_out": jax.random.normal(kwo, (inner_dim, D), dtype=jnp.float32) * 0.1,
        "b_out": jax.random.normal(kbo, (D,), dtype=jnp.float32) * 0.1,
    }

    y = attention_forward(x, params, heads=heads)
    y = jax.block_until_ready(y)

    y_ref = attention_ref(x, params, heads=heads)
    np.testing.assert_allclose(np.asarray(y), np.asarray(y_ref), rtol=2e-2, atol=2e-2)

    print("KERNEL_OK")
</pallas_src>

<mosaic_0001>
module attributes {stable_mosaic.version = 11 : i64} {
  func.func @_fused_attention_kernel(%arg0: i32, %arg1: memref<1x8x32xf32, #tpu.memory_space<vmem>>, %arg2: memref<32x96xf32, #tpu.memory_space<vmem>>, %arg3: memref<32x32xf32, #tpu.memory_space<vmem>>, %arg4: memref<1x32xf32, #tpu.memory_space<vmem>>, %arg5: memref<1x8x32xf32, #tpu.memory_space<vmem>>) attributes {dimension_semantics = [#tpu.dimension_semantics<parallel>], iteration_bounds = array<i64: 2>, scalar_prefetch = 0 : i64, scratch_operands = 0 : i64, tpu.core_type = #tpu.core_type<tc>, window_params = [{transform_indices = @transform_0, window_bounds = array<i64: 1, 8, 32>}, {pipeline_mode = #tpu.pipeline_mode<synchronous>, transform_indices = @transform_1, window_bounds = array<i64: 32, 96>}, {pipeline_mode = #tpu.pipeline_mode<synchronous>, transform_indices = @transform_2, window_bounds = array<i64: 32, 32>}, {pipeline_mode = #tpu.pipeline_mode<synchronous>, transform_indices = @transform_3, window_bounds = array<i64: 1, 32>}, {transform_indices = @transform_4, window_bounds = array<i64: 1, 8, 32>}]} {
    %c0 = arith.constant 0 : index
    %c0_0 = arith.constant 0 : index
    %c0_1 = arith.constant 0 : index
    %0 = vector.load %arg1[%c0, %c0_0, %c0_1] : memref<1x8x32xf32, #tpu.memory_space<vmem>>, vector<1x8x32xf32>
    %1 = vector.shape_cast %0 : vector<1x8x32xf32> to vector<8x32xf32>
    %c0_2 = arith.constant 0 : index
    %c0_3 = arith.constant 0 : index
    %2 = vector.load %arg2[%c0_2, %c0_3] : memref<32x96xf32, #tpu.memory_space<vmem>>, vector<32x96xf32>
    %cst = arith.constant dense<0.000000e+00> : vector<8x96xf32>
    %3 = tpu.matmul %1, %2, %cst {dimension_numbers = #tpu.dot_dimension_numbers<[1], [0], [0], [1], [0, 0, 1, 1], [], []>} : vector<8x32xf32>, vector<32x96xf32>, vector<8x96xf32> -> vector<8x96xf32>
    %4 = vector.extract_strided_slice %3 {offsets = [0, 0], sizes = [8, 16], strides = [1, 1]} : vector<8x96xf32> to vector<8x16xf32>
    %cst_4 = arith.constant 2.500000e-01 : f32
    %5 = vector.broadcast %cst_4 : f32 to vector<8x16xf32>
    %6 = arith.mulf %4, %5 : vector<8x16xf32>
    %7 = vector.extract_strided_slice %3 {offsets = [0, 32], sizes = [8, 16], strides = [1, 1]} : vector<8x96xf32> to vector<8x16xf32>
    %8 = vector.extract_strided_slice %3 {offsets = [0, 64], sizes = [8, 16], strides = [1, 1]} : vector<8x96xf32> to vector<8x16xf32>
    %cst_5 = arith.constant dense<0.000000e+00> : vector<8x8xf32>
    %9 = tpu.matmul %6, %7, %cst_5 {dimension_numbers = #tpu.dot_dimension_numbers<[1], [1], [0], [0], [0, 0, 1, 0], [], []>} : vector<8x16xf32>, vector<8x16xf32>, vector<8x8xf32> -> vector<8x8xf32>
    %cst_6 = arith.constant dense<0xFF800000> : vector<8xf32>
    %10 = vector.multi_reduction <maximumf>, %9, %cst_6 [1] : vector<8x8xf32> to vector<8xf32>
    %11 = vector.shape_cast %10 : vector<8xf32> to vector<8x1xf32>
    %12 = vector.broadcast %11 : vector<8x1xf32> to vector<8x8xf32>
    %13 = arith.subf %9, %12 : vector<8x8xf32>
    %14 = math.exp %13 : vector<8x8xf32>
    %cst_7 = arith.constant dense<0.000000e+00> : vector<8xf32>
    %15 = vector.multi_reduction <add>, %14, %cst_7 [1] : vector<8x8xf32> to vector<8xf32>
    %16 = vector.shape_cast %15 : vector<8xf32> to vector<8x1xf32>
    %17 = tpu.reciprocal %16 {approx = true} : vector<8x1xf32> -> vector<8x1xf32>
    %18 = vector.broadcast %17 : vector<8x1xf32> to vector<8x8xf32>
    %19 = arith.mulf %14, %18 : vector<8x8xf32>
    %cst_8 = arith.constant dense<0.000000e+00> : vector<8x16xf32>
    %20 = tpu.matmul %19, %8, %cst_8 {dimension_numbers = #tpu.dot_dimension_numbers<[1], [0], [0], [1], [0, 0, 1, 1], [], []>} : vector<8x8xf32>, vector<8x16xf32>, vector<8x16xf32> -> vector<8x16xf32>
    %c0_9 = arith.constant 0 : index
    %c0_10 = arith.constant 0 : index
    %21 = vector.load %arg3[%c0_9, %c0_10] : memref<32x32xf32, #tpu.memory_space<vmem>>, vector<16x32xf32>
    %cst_11 = arith.constant dense<0.000000e+00> : vector<8x32xf32>
    %22 = tpu.matmul %20, %21, %cst_11 {dimension_numbers = #tpu.dot_dimension_numbers<[1], [0], [0], [1], [0, 0, 1, 1], [], []>} : vector<8x16xf32>, vector<16x32xf32>, vector<8x32xf32> -> vector<8x32xf32>
    %23 = vector.extract_strided_slice %3 {offsets = [0, 16], sizes = [8, 16], strides = [1, 1]} : vector<8x96xf32> to vector<8x16xf32>
    %cst_12 = arith.constant 2.500000e-01 : f32
    %24 = vector.broadcast %cst_12 : f32 to vector<8x16xf32>
    %25 = arith.mulf %23, %24 : vector<8x16xf32>
    %26 = vector.extract_strided_slice %3 {offsets = [0, 48], sizes = [8, 16], strides = [1, 1]} : vector<8x96xf32> to vector<8x16xf32>
    %27 = vector.extract_strided_slice %3 {offsets = [0, 80], sizes = [8, 16], strides = [1, 1]} : vector<8x96xf32> to vector<8x16xf32>
    %cst_13 = arith.constant dense<0.000000e+00> : vector<8x8xf32>
    %28 = tpu.matmul %25, %26, %cst_13 {dimension_numbers = #tpu.dot_dimension_numbers<[1], [1], [0], [0], [0, 0, 1, 0], [], []>} : vector<8x16xf32>, vector<8x16xf32>, vector<8x8xf32> -> vector<8x8xf32>
    %cst_14 = arith.constant dense<0xFF800000> : vector<8xf32>
    %29 = vector.multi_reduction <maximumf>, %28, %cst_14 [1] : vector<8x8xf32> to vector<8xf32>
    %30 = vector.shape_cast %29 : vector<8xf32> to vector<8x1xf32>
    %31 = vector.broadcast %30 : vector<8x1xf32> to vector<8x8xf32>
    %32 = arith.subf %28, %31 : vector<8x8xf32>
    %33 = math.exp %32 : vector<8x8xf32>
    %cst_15 = arith.constant dense<0.000000e+00> : vector<8xf32>
    %34 = vector.multi_reduction <add>, %33, %cst_15 [1] : vector<8x8xf32> to vector<8xf32>
    %35 = vector.shape_cast %34 : vector<8xf32> to vector<8x1xf32>
    %36 = tpu.reciprocal %35 {approx = true} : vector<8x1xf32> -> vector<8x1xf32>
    %37 = vector.broadcast %36 : vector<8x1xf32> to vector<8x8xf32>
    %38 = arith.mulf %33, %37 : vector<8x8xf32>
    %cst_16 = arith.constant dense<0.000000e+00> : vector<8x16xf32>
    %39 = tpu.matmul %38, %27, %cst_16 {dimension_numbers = #tpu.dot_dimension_numbers<[1], [0], [0], [1], [0, 0, 1, 1], [], []>} : vector<8x8xf32>, vector<8x16xf32>, vector<8x16xf32> -> vector<8x16xf32>
    %c16 = arith.constant 16 : index
    %c0_17 = arith.constant 0 : index
    %40 = vector.load %arg3[%c16, %c0_17] : memref<32x32xf32, #tpu.memory_space<vmem>>, vector<16x32xf32>
    %cst_18 = arith.constant dense<0.000000e+00> : vector<8x32xf32>
    %41 = tpu.matmul %39, %40, %cst_18 {dimension_numbers = #tpu.dot_dimension_numbers<[1], [0], [0], [1], [0, 0, 1, 1], [], []>} : vector<8x16xf32>, vector<16x32xf32>, vector<8x32xf32> -> vector<8x32xf32>
    %42 = arith.addf %22, %41 : vector<8x32xf32>
    %c0_19 = arith.constant 0 : index
    %c0_20 = arith.constant 0 : index
    %43 = vector.load %arg4[%c0_19, %c0_20] : memref<1x32xf32, #tpu.memory_space<vmem>>, vector<1x32xf32>
    %44 = vector.broadcast %43 : vector<1x32xf32> to vector<8x32xf32>
    %45 = arith.addf %42, %44 : vector<8x32xf32>
    %c0_21 = arith.constant 0 : index
    %c0_22 = arith.constant 0 : index
    %c0_23 = arith.constant 0 : index
    %46 = vector.load %arg5[%c0_21, %c0_22, %c0_23] : memref<1x8x32xf32, #tpu.memory_space<vmem>>, vector<1x8x32xf32>
    %47 = vector.shape_cast %46 : vector<1x8x32xf32> to vector<8x32xf32>
    %48 = vector.shape_cast %45 : vector<8x32xf32> to vector<1x8x32xf32>
    tpu.vector_store %arg5[%c0_21, %c0_22, %c0_23], %48 {strides = array<i32>} : memref<1x8x32xf32, #tpu.memory_space<vmem>>, vector<1x8x32xf32>,
    return
  }
  func.func @transform_0(%arg0: i32) -> (i32, i32, i32) {
    %c0_i32 = arith.constant 0 : i32
    %c0_i32_0 = arith.constant 0 : i32
    %c0_i32_1 = arith.constant 0 : i32
    return %arg0, %c0_i32, %c0_i32_0 : i32, i32, i32
  }
  func.func @transform_1(%arg0: i32) -> (i32, i32) {
    %c0_i32 = arith.constant 0 : i32
    %c0_i32_0 = arith.constant 0 : i32
    %c0_i32_1 = arith.constant 0 : i32
    return %c0_i32, %c0_i32_0 : i32, i32
  }
  func.func @transform_2(%arg0: i32) -> (i32, i32) {
    %c0_i32 = arith.constant 0 : i32
    %c0_i32_0 = arith.constant 0 : i32
    %c0_i32_1 = arith.constant 0 : i32
    return %c0_i32, %c0_i32_0 : i32, i32
  }
  func.func @transform_3(%arg0: i32) -> (i32, i32) {
    %c0_i32 = arith.constant 0 : i32
    %c0_i32_0 = arith.constant 0 : i32
    %c0_i32_1 = arith.constant 0 : i32
    return %c0_i32, %c0_i32_0 : i32, i32
  }
  func.func @transform_4(%arg0: i32) -> (i32, i32, i32) {
    %c0_i32 = arith.constant 0 : i32
    %c0_i32_0 = arith.constant 0 : i32
    %c0_i32_1 = arith.constant 0 : i32
    return %arg0, %c0_i32, %c0_i32_0 : i32, i32, i32
  }
}

</mosaic_0001>

<llo_original>
// kernel: tpu_custom_call.1
$region0: #{tpu_custom_call.1}
  #allocation0 [shape = 'u32[]', space=smem, size = 0x4, offset = 0x4, fixed_abs, tag = 'smem constant byte address 0x4 - core index']
  #allocation1 [shape = 'u32[144,128]{1,0:T(1,128)}', space=vmem, size = 0x12000, scoped, tag = 'internal scratch']
  %s0 = inlined_call_operand.hbm [shape: f32[2,8,32], index: 0, kind: input, shape index: {}]
  %s1 = inlined_call_operand.hbm [shape: f32[32,96], index: 1, kind: input, shape index: {}]
  %s2 = inlined_call_operand.hbm [shape: f32[32,32], index: 2, kind: input, shape index: {}]
  %s3 = inlined_call_operand.vmem [shape: f32[1,32], index: 3, kind: input, shape index: {}]
  %s4 = inlined_call_operand.hbm [shape: f32[2,8,32], index: 4, kind: output, shape index: {}]
  %s5 = sld [smem:[#allocation0]]
  $region61: #{tpu_custom_call.1} parent=0
    _
  %s7 = ssub.s32 1, %s5
  %s8 = scalar_select 0, %s7, %s5
  $region1: #{tpu_custom_call.1} parent=0
    #allocation2 [shape = 'u8[8192]{0}', space=vmem, size = 0x2000, scoped, tag = 'input window, operand 0']
    #allocation3 [shape = 's32[2]{0}', space=sflag, size = 0x8, scoped, tag = 'scoped memory for tpu_custom_call.1']
    #allocation4 [shape = 's32[2]{0}', space=sflag, size = 0x8, scoped, tag = 'scoped memory for tpu_custom_call.1']
    #allocation5 [shape = 'u8[16384]{0}', space=vmem, size = 0x4000, scoped, tag = 'input window, operand 1, single buffered']
    #allocation6 [shape = 's32[1]{0}', space=sflag, size = 0x4, scoped, tag = 'scoped memory for tpu_custom_call.1']
    #allocation7 [shape = 'u8[16384]{0}', space=vmem, size = 0x4000, scoped, tag = 'input window, operand 2, single buffered']
    #allocation8 [shape = 'u8[8192]{0}', space=vmem, size = 0x2000, scoped, tag = 'output window, operand 0']
    %9 = vsyncpa [#allocation3], 0
    %s10 = scalar_lea.sflag [#allocation3], 1
    %11 = vsyncpa %s10, 0
    %12 = vsyncpa [#allocation6], 0
    %13 = vsyncpa [#allocation4], 0
    %s14 = scalar_lea.sflag [#allocation4], 1
    %15 = vsyncpa %s14, 0
    loop: start=0, step=1, limit=4
    $region2: #{tpu_custom_call.1} parent=1 // loop_pre_header
      _
    $region3: #{tpu_custom_call.1} parent=1 // loop_header
      %s17 = sphi 0, %s21
      %p18 = scmp.ge.s32.totalorder %s17, 4
      %s27 = sphi 0, %s29
      %s30 = sphi 0, %s27
      %s31 = sphi 0, %s30
      %s47 = sphi 0, %s31
      %s51 = sphi 0, %s51
      %s53 = sphi 0, %s51
      %s54 = sphi 0, %s53
      %s68 = sphi 0, %s54
      %s72 = sphi 0, %s72
      %s74 = sphi 0, %s72
      %s75 = sphi 0, %s74
      %s89 = sphi 0, %s75
      %s93 = sphi 0, %s93
      %s95 = sphi 0, %s93
      %s96 = sphi 0, %s95
      %s110 = sphi 0, %s96
      %s116 = sphi 0, %s118
      %s119 = sphi 0, %s116
      %s120 = sphi 0, %s119
      %s136 = sphi 0, %s120
    $region4: #{tpu_custom_call.1} parent=1 // loop_header_branch
      %20 = sbr.rel (%p18) target = $region8
    $region5: #{tpu_custom_call.1} parent=1 // loop_body
      %s22 = ssub.s32 %s17, 1
      %s23 = ssub.s32 %s17, 2
      %s24 = sadd.s32 %s17, 1
      %s25 = ssub.s32 %s17, %s24
      %p26 = scmp.eq.s32.totalorder %s25, 0
      %s28 = sadd.s32 %s27, 1
      %s29 = scalar_select %p26, %s27, %s28
      %p32 = pneg %p26
      %p33 = scmp.eq.s32.totalorder %s17, 1
      %p34 = por %p32, %p33
      %p35 = scmp.ne.s32.totalorder %s27, %s30
      %p36 = scmp.eq.s32.totalorder %s17, 0
      %p37 = por %p35, %p36
      %p38 = scmp.ne.s32.totalorder %s27, %s30
      %p39 = scmp.eq.s32.totalorder %s22, 1
      %p40 = por %p38, %p39
      %p41 = scmp.ne.s32.totalorder %s30, %s31
      %p42 = scmp.eq.s32.totalorder %s22, 0
      %p43 = por %p41, %p42
      %p44 = scmp.ne.s32.totalorder %s30, %s31
      %p45 = scmp.eq.s32.totalorder %s23, 1
      %p46 = por %p44, %p45
      %p48 = scmp.ne.s32.totalorder %s31, %s47
      %p49 = scmp.eq.s32.totalorder %s23, 0
      %p50 = por %p48, %p49
      %s52 = sadd.s32 %s51, 1
      %p55 = scmp.eq.s32.totalorder %s17, 1
      %p56 = scmp.ne.s32.totalorder %s51, %s53
      %p57 = scmp.eq.s32.totalorder %s17, 0
      %p58 = por %p56, %p57
      %p59 = scmp.ne.s32.totalorder %s51, %s53
      %p60 = scmp.eq.s32.totalorder %s22, 1
      %p61 = por %p59, %p60
      %p62 = scmp.ne.s32.totalorder %s53, %s54
      %p63 = scmp.eq.s32.totalorder %s22, 0
      %p64 = por %p62, %p63
      %p65 = scmp.ne.s32.totalorder %s53, %s54
      %p66 = scmp.eq.s32.totalorder %s23, 1
      %p67 = por %p65, %p66
      %p69 = scmp.ne.s32.totalorder %s54, %s68
      %p70 = scmp.eq.s32.totalorder %s23, 0
      %p71 = por %p69, %p70
      %s73 = sadd.s32 %s72, 1
      %p76 = scmp.eq.s32.totalorder %s17, 1
      %p77 = scmp.ne.s32.totalorder %s72, %s74
      %p78 = scmp.eq.s32.totalorder %s17, 0
      %p79 = por %p77, %p78
      %p80 = scmp.ne.s32.totalorder %s72, %s74
      %p81 = scmp.eq.s32.totalorder %s22, 1
      %p82 = por %p80, %p81
      %p83 = scmp.ne.s32.totalorder %s74, %s75
      %p84 = scmp.eq.s32.totalorder %s22, 0
      %p85 = por %p83, %p84
      %p86 = scmp.ne.s32.totalorder %s74, %s75
      %p87 = scmp.eq.s32.totalorder %s23, 1
      %p88 = por %p86, %p87
      %p90 = scmp.ne.s32.totalorder %s75, %s89
      %p91 = scmp.eq.s32.totalorder %s23, 0
      %p92 = por %p90, %p91
      %s94 = sadd.s32 %s93, 1
      %p97 = scmp.eq.s32.totalorder %s17, 1
      %p98 = scmp.ne.s32.totalorder %s93, %s95
      %p99 = scmp.eq.s32.totalorder %s17, 0
      %p100 = por %p98, %p99
      %p101 = scmp.ne.s32.totalorder %s93, %s95
      %p102 = scmp.eq.s32.totalorder %s22, 1
      %p103 = por %p101, %p102
      %p104 = scmp.ne.s32.totalorder %s95, %s96
      %p105 = scmp.eq.s32.totalorder %s22, 0
      %p106 = por %p104, %p105
      %p107 = scmp.ne.s32.totalorder %s95, %s96
      %p108 = scmp.eq.s32.totalorder %s23, 1
      %p109 = por %p107, %p108
      %p111 = scmp.ne.s32.totalorder %s96, %s110
      %p112 = scmp.eq.s32.totalorder %s23, 0
      %p113 = por %p111, %p112
      %s114 = ssub.s32 %s17, %s24
      %p115 = scmp.eq.s32.totalorder %s114, 0
      %s117 = sadd.s32 %s116, 1
      %s118 = scalar_select %p115, %s116, %s117
      %p121 = pneg %p115
      %p122 = scmp.eq.s32.totalorder %s17, 1
      %p123 = por %p121, %p122
      %p124 = scmp.ne.s32.totalorder %s116, %s119
      %p125 = scmp.eq.s32.totalorder %s17, 0
      %p126 = por %p124, %p125
      %p127 = scmp.ne.s32.totalorder %s116, %s119
      %p128 = scmp.eq.s32.totalorder %s22, 1
      %p129 = por %p127, %p128
      %p130 = scmp.ne.s32.totalorder %s119, %s120
      %p131 = scmp.eq.s32.totalorder %s22, 0
      %p132 = por %p130, %p131
      %p133 = scmp.ne.s32.totalorder %s119, %s120
      %p134 = scmp.eq.s32.totalorder %s23, 1
      %p135 = por %p133, %p134
      %p137 = scmp.ne.s32.totalorder %s120, %s136
      %p138 = scmp.eq.s32.totalorder %s23, 0
      %p139 = por %p137, %p138
      %p140 = scmp.le.s32.totalorder 1, %s17
      %p141 = scmp.lt.s32.totalorder %s17, 3
      %p142 = pnand %p140, %p141
      %p143 = pneg %p142
      // Predicated region
      $region9: #{tpu_custom_call.1} parent=5 // pred_check
        _
      $region10: #{tpu_custom_call.1} parent=5 // pred_check_branch
        %145 = sbr.rel (%p142) target = $region12
      $region11: #{tpu_custom_call.1} parent=5 // pred_region
        %s146 = ssub.s32 %s17, 1
        // Predicated region
        $region13: #{tpu_custom_call.1} parent=11 // pred_check
          %p147 = pneg %p64
        $region14: #{tpu_custom_call.1} parent=11 // pred_check_branch
          %149 = sbr.rel (%p147) target = $region16
        $region15: #{tpu_custom_call.1} parent=11 // pred_region
          %s151 = ssub.s32 512, 512
          %152 = vsyncadd [#allocation6], %s151
          %s153 = sshll.u32 [#allocation5], 4
          %s154 = int_to_ptr.vmem [resolvable:$true] %s153
          %159 = dma.hbm_to_vmem [thread:$0]  %s1, 512, %s154, [#allocation6], 128, 128, 8
        $region16: #{tpu_custom_call.1} parent=11 // pred_fallthru
          _
        // Predicated region
        $region17: #{tpu_custom_call.1} parent=11 // pred_check
          %p160 = pneg %p85
        $region18: #{tpu_custom_call.1} parent=11 // pred_check_branch
          %162 = sbr.rel (%p160) target = $region20
        $region19: #{tpu_custom_call.1} parent=11 // pred_region
          %s164 = ssub.s32 512, 512
          %165 = vsyncadd [#allocation6], %s164
          %s166 = sshll.u32 [#allocation7], 4
          %s167 = int_to_ptr.vmem [resolvable:$true] %s166
          %172 = dma.hbm_to_vmem [thread:$0]  %s2, 512, %s167, [#allocation6], 128, 128, 8
        $region20: #{tpu_custom_call.1} parent=11 // pred_fallthru
          _
        // Predicated region
        $region21: #{tpu_custom_call.1} parent=11 // pred_check
          %p173 = pneg %p106
        $region22: #{tpu_custom_call.1} parent=11 // pred_check_branch
          %175 = sbr.rel (%p173) target = $region24
        $region23: #{tpu_custom_call.1} parent=11 // pred_region
          _
        $region24: #{tpu_custom_call.1} parent=11 // pred_fallthru
          _
      $region12: #{tpu_custom_call.1} parent=5 // pred_fallthru
        _
      %p176 = scmp.lt.s32.totalorder %s17, 2
      // Predicated region
      $region25: #{tpu_custom_call.1} parent=5 // pred_check
        %p177 = pneg %p176
      $region26: #{tpu_custom_call.1} parent=5 // pred_check_branch
        %179 = sbr.rel (%p177) target = $region28
      $region27: #{tpu_custom_call.1} parent=5 // pred_region
        // Predicated region
        $region29: #{tpu_custom_call.1} parent=27 // pred_check
          %p180 = pneg %p37
        $region30: #{tpu_custom_call.1} parent=27 // pred_check_branch
          %182 = sbr.rel (%p180) target = $region32
        $region31: #{tpu_custom_call.1} parent=27 // pred_region
          %s183 = sand.u32 %s27, 1
          %s184 = scalar_lea.sflag [#allocation3], %s183
          %s185 = sand.u32 %s27, 1
          %s186 = smul.addr %s185, 8
          %s187 = scalar_lea.vmem [#allocation2], %s186
          %s189 = ssub.s32 128, 128
          %190 = vsyncadd %s184, %s189
          %s191 = smul.addr %s17, 128
          %s192 = scalar_lea.hbm %s0, %s191
          %s194 = sshll.u32 %s187, 4
          %s195 = int_to_ptr.vmem [resolvable:$true] %s194
          %197 = dma.hbm_to_vmem [thread:$0]  %s192, 128, %s195, %s184
        $region32: #{tpu_custom_call.1} parent=27 // pred_fallthru
          _
      $region28: #{tpu_custom_call.1} parent=5 // pred_fallthru
        _
      %p198 = scmp.le.s32.totalorder 1, %s17
      %p199 = scmp.lt.s32.totalorder %s17, 3
      %p200 = pnand %p198, %p199
      %p201 = pneg %p200
      // Predicated region
      $region33: #{tpu_custom_call.1} parent=5 // pred_check
        _
      $region34: #{tpu_custom_call.1} parent=5 // pred_check_branch
        %203 = sbr.rel (%p200) target = $region36
      $region35: #{tpu_custom_call.1} parent=5 // pred_region
        %s204 = ssub.s32 %s17, 1
        %s205 = sand.u32 %s30, 1
        %s206 = scalar_lea.sflag [#allocation3], %s205
        %s207 = sand.u32 %s30, 1
        %s208 = smul.addr %s207, 8
        %s209 = scalar_lea.vmem [#allocation2], %s208
        // Predicated region
        $region37: #{tpu_custom_call.1} parent=35 // pred_check
          %p210 = pneg %p43
        $region38: #{tpu_custom_call.1} parent=35 // pred_check_branch
          %212 = sbr.rel (%p210) target = $region40
        $region39: #{tpu_custom_call.1} parent=35 // pred_region
          %213 = dma.done %s206, 128
        $region40: #{tpu_custom_call.1} parent=35 // pred_fallthru
          _
        // Predicated region
        $region41: #{tpu_custom_call.1} parent=35 // pred_check
          %p214 = pneg %p64
        $region42: #{tpu_custom_call.1} parent=35 // pred_check_branch
          %216 = sbr.rel (%p214) target = $region44
        $region43: #{tpu_custom_call.1} parent=35 // pred_region
          %217 = dma.done [#allocation6], 512
        $region44: #{tpu_custom_call.1} parent=35 // pred_fallthru
          _
        // Predicated region
        $region45: #{tpu_custom_call.1} parent=35 // pred_check
          %p218 = pneg %p85
        $region46: #{tpu_custom_call.1} parent=35 // pred_check_branch
          %220 = sbr.rel (%p218) target = $region48
        $region47: #{tpu_custom_call.1} parent=35 // pred_region
          %221 = dma.done [#allocation6], 512
        $region48: #{tpu_custom_call.1} parent=35 // pred_fallthru
          _
        %s222 = sand.u32 %s30, 1
        %s223 = scalar_lea.sflag [#allocation3], %s222
        %s224 = sand.u32 %s30, 1
        %s225 = smul.addr %s224, 8
        %s226 = scalar_lea.vmem [#allocation2], %s225
        %p227 = pneg %p43
        %p228 = pneg %p40
        %p229 = pneg %p64
        %p230 = pneg %p61
        %p231 = pneg %p85
        %p232 = pneg %p82
        %p233 = pneg %p106
        %p234 = pneg %p103
        %p235 = pneg %p132
        %p236 = pneg %p129
        %s237 = sand.u32 %s119, 1
        %s238 = scalar_lea.sflag [#allocation4], %s237
        %s239 = sand.u32 %s119, 1
        %s240 = smul.addr %s239, 8
        %s241 = scalar_lea.vmem [#allocation8], %s240
        %v242 = vld [vmem:[%s209] sm:$0xff]
        %v243 = vld [vmem:[#allocation5] sm:$0xff]
        %v244 = vld [vmem:[#allocation5 + $0x8] sm:$0xff]
        %v245 = vld [vmem:[#allocation5 + $0x10] sm:$0xff]
        %v246 = vld [vmem:[#allocation5 + $0x18] sm:$0xff]
        %vm247 = vcmask 261120
        %v249 = vsel %vm247, %v242, 0
        %251 = vmatprep.subr.mxu0 0.0
        %252 = vmatpush1.msra.mxu0 0.0
        %253 = vmatprep.subr.mxu0 0.0
        %254 = vmatpush1.msra.mxu0 0.0
        %255 = vmatprep.subr.mxu0 0.0
        %256 = vmatpush1.msra.mxu0 0.0
        %257 = vmatprep.subr.mxu0 0.0
        %258 = vmatpush1.msra.mxu0 0.0
        %259 = vmatprep.subr.mxu0 0.0
        %260 = vmatpush1.msra.mxu0 0.0
        %261 = vmatprep.subr.mxu0 0.0
        %262 = vmatpush1.msra.mxu0 0.0
        %263 = vmatprep.subr.mxu0 0.0
        %264 = vmatpush1.msra.mxu0 0.0
        %265 = vmatprep.subr.mxu0 0.0
        %266 = vmatpush1.msra.mxu0 0.0
        %267 = vmatprep.subr.mxu0 0.0
        %268 = vmatpush1.msra.mxu0 0.0
        %269 = vmatprep.subr.mxu0 0.0
        %270 = vmatpush1.msra.mxu0 0.0
        %271 = vmatprep.subr.mxu0 0.0
        %272 = vmatpush1.msra.mxu0 0.0
        %273 = vmatprep.subr.mxu0 0.0
        %274 = vmatpush1.msra.mxu0 0.0
        %275 = vmatprep.subr.mxu0 0.0
        %276 = vmatpush1.msra.mxu0 %v246
        %277 = vmatprep.subr.mxu0 0.0
        %278 = vmatpush1.msra.mxu0 %v245
        %279 = vmatprep.subr.mxu0 0.0
        %280 = vmatpush1.msra.mxu0 %v244
        %281 = vmatprep.subr.mxu0 0.0
        %282 = vmatpush1.msra.mxu0 %v243
        %283 = vmatprep.subr.mxu0 0.0
        %284 = vmatpush2.msra.mxu0 0.0
        %285 = vmatprep.subr.mxu0 0.0
        %286 = vmatpush2.msra.mxu0 0.0
        %287 = vmatprep.subr.mxu0 0.0
        %288 = vmatpush2.msra.mxu0 0.0
        %289 = vmatprep.subr.mxu0 0.0
        %290 = vmatpush2.msra.mxu0 0.0
        %291 = vmatprep.subr.mxu0 0.0
        %292 = vmatpush2.msra.mxu0 0.0
        %293 = vmatprep.subr.mxu0 0.0
        %294 = vmatpush2.msra.mxu0 0.0
        %295 = vmatprep.subr.mxu0 0.0
        %296 = vmatpush2.msra.mxu0 0.0
        %297 = vmatprep.subr.mxu0 0.0
        %298 = vmatpush2.msra.mxu0 0.0
        %299 = vmatprep.subr.mxu0 0.0
        %300 = vmatpush2.msra.mxu0 0.0
        %301 = vmatprep.subr.mxu0 0.0
        %302 = vmatpush2.msra.mxu0 0.0
        %303 = vmatprep.subr.mxu0 0.0
        %304 = vmatpush2.msra.mxu0 0.0
        %305 = vmatprep.subr.mxu0 0.0
        %306 = vmatpush2.msra.mxu0 0.0
        %307 = vmatprep.subr.mxu0 0.0
        %308 = vmatpush2.msra.mxu0 0.0
        %309 = vmatprep.subr.mxu0 0.0
        %310 = vmatpush2.msra.mxu0 0.0
        %311 = vmatprep.subr.mxu0 0.0
        %312 = vmatpush2.msra.mxu0 0.0
        %313 = vmatprep.subr.mxu0 0.0
        %314 = vmatpush2.msra.mxu0 0.0
        %315 = vmatprep.mubr.f32.mxu0 0.0
        %316 = vmatmul.mubr.f32.gmra.mxu0 %v249
        %v317 = vpop.f32.mrf.mxu0
        %v318 = vadd.f32 0.0, %v317
        %v319 = vpop.f32.mrf.mxu0
        %320 = vdwg.mxu0
        %v321 = vmul.f32 %v318, 0.25
        %323 = vrot.lane.b32.xlu0 %v318, 96
        %v324 = vpop.permute.xlu0 %323
        %vm325 = vcmask 130048
        %v327 = vsel %vm325, %v321, 0
        %v329 = vsel %vm325, %v324, 0
        %331 = vmatprep.subr.mxu0 0.0
        %332 = vmatpush1.xpose.msra.mxu0 0.0
        %333 = vmatprep.subr.mxu0 0.0
        %334 = vmatpush1.xpose.msra.mxu0 0.0
        %335 = vmatprep.subr.mxu0 0.0
        %336 = vmatpush1.xpose.msra.mxu0 0.0
        %337 = vmatprep.subr.mxu0 0.0
        %338 = vmatpush1.xpose.msra.mxu0 0.0
        %339 = vmatprep.subr.mxu0 0.0
        %340 = vmatpush1.xpose.msra.mxu0 0.0
        %341 = vmatprep.subr.mxu0 0.0
        %342 = vmatpush1.xpose.msra.mxu0 0.0
        %343 = vmatprep.subr.mxu0 0.0
        %344 = vmatpush1.xpose.msra.mxu0 0.0
        %345 = vmatprep.subr.mxu0 0.0
        %346 = vmatpush1.xpose.msra.mxu0 0.0
        %347 = vmatprep.subr.mxu0 0.0
        %348 = vmatpush1.xpose.msra.mxu0 0.0
        %349 = vmatprep.subr.mxu0 0.0
        %350 = vmatpush1.xpose.msra.mxu0 0.0
        %351 = vmatprep.subr.mxu0 0.0
        %352 = vmatpush1.xpose.msra.mxu0 0.0
        %353 = vmatprep.subr.mxu0 0.0
        %354 = vmatpush1.xpose.msra.mxu0 0.0
        %355 = vmatprep.subr.mxu0 0.0
        %356 = vmatpush1.xpose.msra.mxu0 0.0
        %357 = vmatprep.subr.mxu0 0.0
        %358 = vmatpush1.xpose.msra.mxu0 0.0
        %359 = vmatprep.subr.mxu0 0.0
        %360 = vmatpush1.xpose.msra.mxu0 0.0
        %361 = vmatprep.subr.mxu0 0.0
        %362 = vmatpush1.xpose.msra.mxu0 %v329
        %363 = vmatprep.subr.mxu0 0.0
        %364 = vmatpush2.xpose.msra.mxu0 0.0
        %365 = vmatprep.subr.mxu0 0.0
        %366 = vmatpush2.xpose.msra.mxu0 0.0
        %367 = vmatprep.subr.mxu0 0.0
        %368 = vmatpush2.xpose.msra.mxu0 0.0
        %369 = vmatprep.subr.mxu0 0.0
        %370 = vmatpush2.xpose.msra.mxu0 0.0
        %371 = vmatprep.subr.mxu0 0.0
        %372 = vmatpush2.xpose.msra.mxu0 0.0
        %373 = vmatprep.subr.mxu0 0.0
        %374 = vmatpush2.xpose.msra.mxu0 0.0
        %375 = vmatprep.subr.mxu0 0.0
        %376 = vmatpush2.xpose.msra.mxu0 0.0
        %377 = vmatprep.subr.mxu0 0.0
        %378 = vmatpush2.xpose.msra.mxu0 0.0
        %379 = vmatprep.subr.mxu0 0.0
        %380 = vmatpush2.xpose.msra.mxu0 0.0
        %381 = vmatprep.subr.mxu0 0.0
        %382 = vmatpush2.xpose.msra.mxu0 0.0
        %383 = vmatprep.subr.mxu0 0.0
        %384 = vmatpush2.xpose.msra.mxu0 0.0
        %385 = vmatprep.subr.mxu0 0.0
        %386 = vmatpush2.xpose.msra.mxu0 0.0
        %387 = vmatprep.subr.mxu0 0.0
        %388 = vmatpush2.xpose.msra.mxu0 0.0
        %389 = vmatprep.subr.mxu0 0.0
        %390 = vmatpush2.xpose.msra.mxu0 0.0
        %391 = vmatprep.subr.mxu0 0.0
        %392 = vmatpush2.xpose.msra.mxu0 0.0
        %393 = vmatprep.subr.mxu0 0.0
        %394 = vmatpush2.xpose.msra.mxu0 0.0
        %395 = vmatprep.mubr.f32.mxu0 0.0
        %396 = vmatmul.mubr.f32.gmra.mxu0 %v327
        %v397 = vpop.f32.mrf.mxu0
        %v398 = vadd.f32 0.0, %v397
        %v399 = vpop.f32.mrf.mxu0
        %400 = vdwg.mxu0
        %vm401 = vcmask 64512
        %v402 = vsel %vm401, %v398, -inf
        %403 = vmax.xlane.f32.xlu0 %v402
        %v404 = vpop.xlane.xlu0 %403
        %v405 = vsub.f32 %v398, %v404
        %v406 = vmul.f32 %v405, 1.442695
        %v407 = vpow.pop %v406
        %v408 = vsel %vm401, %v407, 0.0
        %409 = vadd.xlane.f32.xlu0 %v408
        %v410 = vpop.xlane.xlu0 %409
        %v411 = vrcp.pop %v410
        %v412 = vmul.f32 %v407, %v411
        %413 = vrot.lane.b32.xlu0 %v318, 64
        %v414 = vpop.permute.xlu0 %413
        %v417 = vsel %vm401, %v412, 0
        %419 = vmatprep.subr.mxu0 0.0
        %420 = vmatpush1.msra.mxu0 0.0
        %421 = vmatprep.subr.mxu0 0.0
        %422 = vmatpush1.msra.mxu0 0.0
        %423 = vmatprep.subr.mxu0 0.0
        %424 = vmatpush1.msra.mxu0 0.0
        %425 = vmatprep.subr.mxu0 0.0
        %426 = vmatpush1.msra.mxu0 0.0
        %427 = vmatprep.subr.mxu0 0.0
        %428 = vmatpush1.msra.mxu0 0.0
        %429 = vmatprep.subr.mxu0 0.0
        %430 = vmatpush1.msra.mxu0 0.0
        %431 = vmatprep.subr.mxu0 0.0
        %432 = vmatpush1.msra.mxu0 0.0
        %433 = vmatprep.subr.mxu0 0.0
        %434 = vmatpush1.msra.mxu0 0.0
        %435 = vmatprep.subr.mxu0 0.0
        %436 = vmatpush1.msra.mxu0 0.0
        %437 = vmatprep.subr.mxu0 0.0
        %438 = vmatpush1.msra.mxu0 0.0
        %439 = vmatprep.subr.mxu0 0.0
        %440 = vmatpush1.msra.mxu0 0.0
        %441 = vmatprep.subr.mxu0 0.0
        %442 = vmatpush1.msra.mxu0 0.0
        %443 = vmatprep.subr.mxu0 0.0
        %444 = vmatpush1.msra.mxu0 0.0
        %445 = vmatprep.subr.mxu0 0.0
        %446 = vmatpush1.msra.mxu0 0.0
        %447 = vmatprep.subr.mxu0 0.0
        %448 = vmatpush1.msra.mxu0 0.0
        %449 = vmatprep.subr.mxu0 0.0
        %450 = vmatpush1.msra.mxu0 %v414
        %451 = vmatprep.subr.mxu0 0.0
        %452 = vmatpush2.msra.mxu0 0.0
        %453 = vmatprep.subr.mxu0 0.0
        %454 = vmatpush2.msra.mxu0 0.0
        %455 = vmatprep.subr.mxu0 0.0
        %456 = vmatpush2.msra.mxu0 0.0
        %457 = vmatprep.subr.mxu0 0.0
        %458 = vmatpush2.msra.mxu0 0.0
        %459 = vmatprep.subr.mxu0 0.0
        %460 = vmatpush2.msra.mxu0 0.0
        %461 = vmatprep.subr.mxu0 0.0
        %462 = vmatpush2.msra.mxu0 0.0
        %463 = vmatprep.subr.mxu0 0.0
        %464 = vmatpush2.msra.mxu0 0.0
        %465 = vmatprep.subr.mxu0 0.0
        %466 = vmatpush2.msra.mxu0 0.0
        %467 = vmatprep.subr.mxu0 0.0
        %468 = vmatpush2.msra.mxu0 0.0
        %469 = vmatprep.subr.mxu0 0.0
        %470 = vmatpush2.msra.mxu0 0.0
        %471 = vmatprep.subr.mxu0 0.0
        %472 = vmatpush2.msra.mxu0 0.0
        %473 = vmatprep.subr.mxu0 0.0
        %474 = vmatpush2.msra.mxu0 0.0
        %475 = vmatprep.subr.mxu0 0.0
        %476 = vmatpush2.msra.mxu0 0.0
        %477 = vmatprep.subr.mxu0 0.0
        %478 = vmatpush2.msra.mxu0 0.0
        %479 = vmatprep.subr.mxu0 0.0
        %480 = vmatpush2.msra.mxu0 0.0
        %481 = vmatprep.subr.mxu0 0.0
        %482 = vmatpush2.msra.mxu0 0.0
        %483 = vmatprep.mubr.f32.mxu0 0.0
        %484 = vmatmul.mubr.f32.gmra.mxu0 %v417
        %v485 = vpop.f32.mrf.mxu0
        %v486 = vadd.f32 0.0, %v485
        %v487 = vpop.f32.mrf.mxu0
        %488 = vdwg.mxu0
        %v489 = vld [vmem:[#allocation7] sm:$0xff]
        %v490 = vld [vmem:[#allocation7 + $0x8] sm:$0xff]
        %491 = vrot.lane.b32.xlu0 %v321, 112
        %v492 = vpop.permute.xlu0 %491
        %493 = vrot.lane.b32.xlu0 %v318, 80
        %v494 = vpop.permute.xlu0 %493
        %v495 = vsel %vm325, %v492, 0
        %v497 = vsel %vm325, %v494, 0
        %499 = vmatprep.subr.mxu0 0.0
        %500 = vmatpush1.xpose.msra.mxu0 0.0
        %501 = vmatprep.subr.mxu0 0.0
        %502 = vmatpush1.xpose.msra.mxu0 0.0
        %503 = vmatprep.subr.mxu0 0.0
        %504 = vmatpush1.xpose.msra.mxu0 0.0
        %505 = vmatprep.subr.mxu0 0.0
        %506 = vmatpush1.xpose.msra.mxu0 0.0
        %507 = vmatprep.subr.mxu0 0.0
        %508 = vmatpush1.xpose.msra.mxu0 0.0
        %509 = vmatprep.subr.mxu0 0.0
        %510 = vmatpush1.xpose.msra.mxu0 0.0
        %511 = vmatprep.subr.mxu0 0.0
        %512 = vmatpush1.xpose.msra.mxu0 0.0
        %513 = vmatprep.subr.mxu0 0.0
        %514 = vmatpush1.xpose.msra.mxu0 0.0
        %515 = vmatprep.subr.mxu0 0.0
        %516 = vmatpush1.xpose.msra.mxu0 0.0
        %517 = vmatprep.subr.mxu0 0.0
        %518 = vmatpush1.xpose.msra.mxu0 0.0
        %519 = vmatprep.subr.mxu0 0.0
        %520 = vmatpush1.xpose.msra.mxu0 0.0
        %521 = vmatprep.subr.mxu0 0.0
        %522 = vmatpush1.xpose.msra.mxu0 0.0
        %523 = vmatprep.subr.mxu0 0.0
        %524 = vmatpush1.xpose.msra.mxu0 0.0
        %525 = vmatprep.subr.mxu0 0.0
        %526 = vmatpush1.xpose.msra.mxu0 0.0
        %527 = vmatprep.subr.mxu0 0.0
        %528 = vmatpush1.xpose.msra.mxu0 0.0
        %529 = vmatprep.subr.mxu0 0.0
        %530 = vmatpush1.xpose.msra.mxu0 %v497
        %531 = vmatprep.subr.mxu0 0.0
        %532 = vmatpush2.xpose.msra.mxu0 0.0
        %533 = vmatprep.subr.mxu0 0.0
        %534 = vmatpush2.xpose.msra.mxu0 0.0
        %535 = vmatprep.subr.mxu0 0.0
        %536 = vmatpush2.xpose.msra.mxu0 0.0
        %537 = vmatprep.subr.mxu0 0.0
        %538 = vmatpush2.xpose.msra.mxu0 0.0
        %539 = vmatprep.subr.mxu0 0.0
        %540 = vmatpush2.xpose.msra.mxu0 0.0
        %541 = vmatprep.subr.mxu0 0.0
        %542 = vmatpush2.xpose.msra.mxu0 0.0
        %543 = vmatprep.subr.mxu0 0.0
        %544 = vmatpush2.xpose.msra.mxu0 0.0
        %545 = vmatprep.subr.mxu0 0.0
        %546 = vmatpush2.xpose.msra.mxu0 0.0
        %547 = vmatprep.subr.mxu0 0.0
        %548 = vmatpush2.xpose.msra.mxu0 0.0
        %549 = vmatprep.subr.mxu0 0.0
        %550 = vmatpush2.xpose.msra.mxu0 0.0
        %551 = vmatprep.subr.mxu0 0.0
        %552 = vmatpush2.xpose.msra.mxu0 0.0
        %553 = vmatprep.subr.mxu0 0.0
        %554 = vmatpush2.xpose.msra.mxu0 0.0
        %555 = vmatprep.subr.mxu0 0.0
        %556 = vmatpush2.xpose.msra.mxu0 0.0
        %557 = vmatprep.subr.mxu0 0.0
        %558 = vmatpush2.xpose.msra.mxu0 0.0
        %559 = vmatprep.subr.mxu0 0.0
        %560 = vmatpush2.xpose.msra.mxu0 0.0
        %561 = vmatprep.subr.mxu0 0.0
        %562 = vmatpush2.xpose.msra.mxu0 0.0
        %563 = vmatprep.mubr.f32.mxu0 0.0
        %564 = vmatmul.mubr.f32.gmra.mxu0 %v495
        %v565 = vpop.f32.mrf.mxu0
        %v566 = vadd.f32 0.0, %v565
        %v567 = vpop.f32.mrf.mxu0
        %568 = vdwg.mxu0
        %v569 = vsel %vm401, %v566, -inf
        %570 = vmax.xlane.f32.xlu0 %v569
        %v571 = vpop.xlane.xlu0 %570
        %v572 = vsub.f32 %v566, %v571
        %v573 = vmul.f32 %v572, 1.442695
        %v574 = vpow.pop %v573
        %v575 = vsel %vm401, %v574, 0.0
        %576 = vadd.xlane.f32.xlu0 %v575
        %v577 = vpop.xlane.xlu0 %576
        %v578 = vrcp.pop %v577
        %v579 = vmul.f32 %v574, %v578
        %580 = vrot.lane.b32.xlu0 %v318, 48
        %v581 = vpop.permute.xlu0 %580
        %v584 = vsel %vm401, %v579, 0
        %586 = vmatprep.subr.mxu0 0.0
        %587 = vmatpush1.msra.mxu0 0.0
        %588 = vmatprep.subr.mxu0 0.0
        %589 = vmatpush1.msra.mxu0 0.0
        %590 = vmatprep.subr.mxu0 0.0
        %591 = vmatpush1.msra.mxu0 0.0
        %592 = vmatprep.subr.mxu0 0.0
        %593 = vmatpush1.msra.mxu0 0.0
        %594 = vmatprep.subr.mxu0 0.0
        %595 = vmatpush1.msra.mxu0 0.0
        %596 = vmatprep.subr.mxu0 0.0
        %597 = vmatpush1.msra.mxu0 0.0
        %598 = vmatprep.subr.mxu0 0.0
        %599 = vmatpush1.msra.mxu0 0.0
        %600 = vmatprep.subr.mxu0 0.0
        %601 = vmatpush1.msra.mxu0 0.0
        %602 = vmatprep.subr.mxu0 0.0
        %603 = vmatpush1.msra.mxu0 0.0
        %604 = vmatprep.subr.mxu0 0.0
        %605 = vmatpush1.msra.mxu0 0.0
        %606 = vmatprep.subr.mxu0 0.0
        %607 = vmatpush1.msra.mxu0 0.0
        %608 = vmatprep.subr.mxu0 0.0
        %609 = vmatpush1.msra.mxu0 0.0
        %610 = vmatprep.subr.mxu0 0.0
        %611 = vmatpush1.msra.mxu0 0.0
        %612 = vmatprep.subr.mxu0 0.0
        %613 = vmatpush1.msra.mxu0 0.0
        %614 = vmatprep.subr.mxu0 0.0
        %615 = vmatpush1.msra.mxu0 0.0
        %616 = vmatprep.subr.mxu0 0.0
        %617 = vmatpush1.msra.mxu0 %v581
        %618 = vmatprep.subr.mxu0 0.0
        %619 = vmatpush2.msra.mxu0 0.0
        %620 = vmatprep.subr.mxu0 0.0
        %621 = vmatpush2.msra.mxu0 0.0
        %622 = vmatprep.subr.mxu0 0.0
        %623 = vmatpush2.msra.mxu0 0.0
        %624 = vmatprep.subr.mxu0 0.0
        %625 = vmatpush2.msra.mxu0 0.0
        %626 = vmatprep.subr.mxu0 0.0
        %627 = vmatpush2.msra.mxu0 0.0
        %628 = vmatprep.subr.mxu0 0.0
        %629 = vmatpush2.msra.mxu0 0.0
        %630 = vmatprep.subr.mxu0 0.0
        %631 = vmatpush2.msra.mxu0 0.0
        %632 = vmatprep.subr.mxu0 0.0
        %633 = vmatpush2.msra.mxu0 0.0
        %634 = vmatprep.subr.mxu0 0.0
        %635 = vmatpush2.msra.mxu0 0.0
        %636 = vmatprep.subr.mxu0 0.0
        %637 = vmatpush2.msra.mxu0 0.0
        %638 = vmatprep.subr.mxu0 0.0
        %639 = vmatpush2.msra.mxu0 0.0
        %640 = vmatprep.subr.mxu0 0.0
        %641 = vmatpush2.msra.mxu0 0.0
        %642 = vmatprep.subr.mxu0 0.0
        %643 = vmatpush2.msra.mxu0 0.0
        %644 = vmatprep.subr.mxu0 0.0
        %645 = vmatpush2.msra.mxu0 0.0
        %646 = vmatprep.subr.mxu0 0.0
        %647 = vmatpush2.msra.mxu0 0.0
        %648 = vmatprep.subr.mxu0 0.0
        %649 = vmatpush2.msra.mxu0 0.0
        %650 = vmatprep.mubr.f32.mxu0 0.0
        %651 = vmatmul.mubr.f32.gmra.mxu0 %v584
        %v652 = vpop.f32.mrf.mxu0
        %v653 = vadd.f32 0.0, %v652
        %v654 = vpop.f32.mrf.mxu0
        %655 = vdwg.mxu0
        %v656 = vld [vmem:[#allocation7 + $0x10] sm:$0xff]
        %v657 = vld [vmem:[#allocation7 + $0x18] sm:$0xff]
        %v659 = vsel %vm325, %v653, 0
        %661 = vmatprep.subr.mxu0 0.0
        %662 = vmatpush1.msra.mxu0 0.0
        %663 = vmatprep.subr.mxu0 0.0
        %664 = vmatpush1.msra.mxu0 0.0
        %665 = vmatprep.subr.mxu0 0.0
        %666 = vmatpush1.msra.mxu0 0.0
        %667 = vmatprep.subr.mxu0 0.0
        %668 = vmatpush1.msra.mxu0 0.0
        %669 = vmatprep.subr.mxu0 0.0
        %670 = vmatpush1.msra.mxu0 0.0
        %671 = vmatprep.subr.mxu0 0.0
        %672 = vmatpush1.msra.mxu0 0.0
        %673 = vmatprep.subr.mxu0 0.0
        %674 = vmatpush1.msra.mxu0 0.0
        %675 = vmatprep.subr.mxu0 0.0
        %676 = vmatpush1.msra.mxu0 0.0
        %677 = vmatprep.subr.mxu0 0.0
        %678 = vmatpush1.msra.mxu0 0.0
        %679 = vmatprep.subr.mxu0 0.0
        %680 = vmatpush1.msra.mxu0 0.0
        %681 = vmatprep.subr.mxu0 0.0
        %682 = vmatpush1.msra.mxu0 0.0
        %683 = vmatprep.subr.mxu0 0.0
        %684 = vmatpush1.msra.mxu0 0.0
        %685 = vmatprep.subr.mxu0 0.0
        %686 = vmatpush1.msra.mxu0 0.0
        %687 = vmatprep.subr.mxu0 0.0
        %688 = vmatpush1.msra.mxu0 0.0
        %689 = vmatprep.subr.mxu0 0.0
        %690 = vmatpush1.msra.mxu0 %v657
        %691 = vmatprep.subr.mxu0 0.0
        %692 = vmatpush1.msra.mxu0 %v656
        %693 = vmatprep.subr.mxu0 0.0
        %694 = vmatpush2.msra.mxu0 0.0
        %695 = vmatprep.subr.mxu0 0.0
        %696 = vmatpush2.msra.mxu0 0.0
        %697 = vmatprep.subr.mxu0 0.0
        %698 = vmatpush2.msra.mxu0 0.0
        %699 = vmatprep.subr.mxu0 0.0
        %700 = vmatpush2.msra.mxu0 0.0
        %701 = vmatprep.subr.mxu0 0.0
        %702 = vmatpush2.msra.mxu0 0.0
        %703 = vmatprep.subr.mxu0 0.0
        %704 = vmatpush2.msra.mxu0 0.0
        %705 = vmatprep.subr.mxu0 0.0
        %706 = vmatpush2.msra.mxu0 0.0
        %707 = vmatprep.subr.mxu0 0.0
        %708 = vmatpush2.msra.mxu0 0.0
        %709 = vmatprep.subr.mxu0 0.0
        %710 = vmatpush2.msra.mxu0 0.0
        %711 = vmatprep.subr.mxu0 0.0
        %712 = vmatpush2.msra.mxu0 0.0
        %713 = vmatprep.subr.mxu0 0.0
        %714 = vmatpush2.msra.mxu0 0.0
        %715 = vmatprep.subr.mxu0 0.0
        %716 = vmatpush2.msra.mxu0 0.0
        %717 = vmatprep.subr.mxu0 0.0
        %718 = vmatpush2.msra.mxu0 0.0
        %719 = vmatprep.subr.mxu0 0.0
        %720 = vmatpush2.msra.mxu0 0.0
        %721 = vmatprep.subr.mxu0 0.0
        %722 = vmatpush2.msra.mxu0 0.0
        %723 = vmatprep.subr.mxu0 0.0
        %724 = vmatpush2.msra.mxu0 0.0
        %725 = vmatprep.mubr.f32.mxu0 0.0
        %726 = vmatmul.mubr.f32.gmra.mxu0 %v659
        %v727 = vpop.f32.mrf.mxu0
        %v728 = vadd.f32 0.0, %v727
        %v729 = vpop.f32.mrf.mxu0
        %730 = vdwg.mxu0
        %v732 = vsel %vm325, %v486, 0
        %734 = vmatprep.subr.mxu0 0.0
        %735 = vmatpush1.msra.mxu0 0.0
        %736 = vmatprep.subr.mxu0 0.0
        %737 = vmatpush1.msra.mxu0 0.0
        %738 = vmatprep.subr.mxu0 0.0
        %739 = vmatpush1.msra.mxu0 0.0
        %740 = vmatprep.subr.mxu0 0.0
        %741 = vmatpush1.msra.mxu0 0.0
        %742 = vmatprep.subr.mxu0 0.0
        %743 = vmatpush1.msra.mxu0 0.0
        %744 = vmatprep.subr.mxu0 0.0
        %745 = vmatpush1.msra.mxu0 0.0
        %746 = vmatprep.subr.mxu0 0.0
        %747 = vmatpush1.msra.mxu0 0.0
        %748 = vmatprep.subr.mxu0 0.0
        %749 = vmatpush1.msra.mxu0 0.0
        %750 = vmatprep.subr.mxu0 0.0
        %751 = vmatpush1.msra.mxu0 0.0
        %752 = vmatprep.subr.mxu0 0.0
        %753 = vmatpush1.msra.mxu0 0.0
        %754 = vmatprep.subr.mxu0 0.0
        %755 = vmatpush1.msra.mxu0 0.0
        %756 = vmatprep.subr.mxu0 0.0
        %757 = vmatpush1.msra.mxu0 0.0
        %758 = vmatprep.subr.mxu0 0.0
        %759 = vmatpush1.msra.mxu0 0.0
        %760 = vmatprep.subr.mxu0 0.0
        %761 = vmatpush1.msra.mxu0 0.0
        %762 = vmatprep.subr.mxu0 0.0
        %763 = vmatpush1.msra.mxu0 %v490
        %764 = vmatprep.subr.mxu0 0.0
        %765 = vmatpush1.msra.mxu0 %v489
        %766 = vmatprep.subr.mxu0 0.0
        %767 = vmatpush2.msra.mxu0 0.0
        %768 = vmatprep.subr.mxu0 0.0
        %769 = vmatpush2.msra.mxu0 0.0
        %770 = vmatprep.subr.mxu0 0.0
        %771 = vmatpush2.msra.mxu0 0.0
        %772 = vmatprep.subr.mxu0 0.0
        %773 = vmatpush2.msra.mxu0 0.0
        %774 = vmatprep.subr.mxu0 0.0
        %775 = vmatpush2.msra.mxu0 0.0
        %776 = vmatprep.subr.mxu0 0.0
        %777 = vmatpush2.msra.mxu0 0.0
        %778 = vmatprep.subr.mxu0 0.0
        %779 = vmatpush2.msra.mxu0 0.0
        %780 = vmatprep.subr.mxu0 0.0
        %781 = vmatpush2.msra.mxu0 0.0
        %782 = vmatprep.subr.mxu0 0.0
        %783 = vmatpush2.msra.mxu0 0.0
        %784 = vmatprep.subr.mxu0 0.0
        %785 = vmatpush2.msra.mxu0 0.0
        %786 = vmatprep.subr.mxu0 0.0
        %787 = vmatpush2.msra.mxu0 0.0
        %788 = vmatprep.subr.mxu0 0.0
        %789 = vmatpush2.msra.mxu0 0.0
        %790 = vmatprep.subr.mxu0 0.0
        %791 = vmatpush2.msra.mxu0 0.0
        %792 = vmatprep.subr.mxu0 0.0
        %793 = vmatpush2.msra.mxu0 0.0
        %794 = vmatprep.subr.mxu0 0.0
        %795 = vmatpush2.msra.mxu0 0.0
        %796 = vmatprep.subr.mxu0 0.0
        %797 = vmatpush2.msra.mxu0 0.0
        %798 = vmatprep.mubr.f32.mxu0 0.0
        %799 = vmatmul.mubr.f32.gmra.mxu0 %v732
        %v800 = vpop.f32.mrf.mxu0
        %v801 = vadd.f32 %v728, %v800
        %v802 = vpop.f32.mrf.mxu0
        %803 = vdwg.mxu0
        %v804 = vld [vmem:[%s3] sm:$0x1]
        %v806 = vlaneseq
        %v807 = vshrl.u32 %v806, 7
        %v808 = vsub.s32 0, %v807
        %v809 = vrot.slane %v804, %v808
        %v811 = vadd.f32 %v801, %v809
        %812 = vst.msk [vmem:[%s241] sm:$0xff] %vm247, %v811
        %s813 = sand.u32 %s119, 1
        %s814 = scalar_lea.sflag [#allocation4], %s813
        %s815 = sand.u32 %s119, 1
        %s816 = smul.addr %s815, 8
        %s817 = scalar_lea.vmem [#allocation8], %s816
        // Predicated region
        $region49: #{tpu_custom_call.1} parent=35 // pred_check
          %p818 = pneg %p129
        $region50: #{tpu_custom_call.1} parent=35 // pred_check_branch
          %820 = sbr.rel (%p818) target = $region52
        $region51: #{tpu_custom_call.1} parent=35 // pred_region
          %s822 = ssub.s32 128, 128
          %823 = vsyncadd %s814, %s822
          %s824 = smul.addr %s22, 128
          %s825 = scalar_lea.hbm %s4, %s824
          %s827 = sshll.u32 %s817, 4
          %s828 = int_to_ptr.vmem [resolvable:$true] %s827
          %830 = dma.vmem_to_hbm [thread:$0]  %s828, 128, %s825, %s814
        $region52: #{tpu_custom_call.1} parent=35 // pred_fallthru
          _
      $region36: #{tpu_custom_call.1} parent=5 // pred_fallthru
        _
      %p831 = scmp.le.s32.totalorder 2, %s17
      // Predicated region
      $region53: #{tpu_custom_call.1} parent=5 // pred_check
        %p832 = pneg %p831
      $region54: #{tpu_custom_call.1} parent=5 // pred_check_branch
        %834 = sbr.rel (%p832) target = $region56
      $region55: #{tpu_custom_call.1} parent=5 // pred_region
        %s835 = ssub.s32 %s17, 2
        // Predicated region
        $region57: #{tpu_custom_call.1} parent=55 // pred_check
          %p836 = pneg %p135
        $region58: #{tpu_custom_call.1} parent=55 // pred_check_branch
          %838 = sbr.rel (%p836) target = $region60
        $region59: #{tpu_custom_call.1} parent=55 // pred_region
          %s839 = sand.u32 %s120, 1
          %s840 = scalar_lea.sflag [#allocation4], %s839
          %s841 = sand.u32 %s120, 1
          %s842 = smul.addr %s841, 8
          %s843 = scalar_lea.vmem [#allocation8], %s842
          %844 = dma.done %s840, 128
        $region60: #{tpu_custom_call.1} parent=55 // pred_fallthru
          _
      $region56: #{tpu_custom_call.1} parent=5 // pred_fallthru
        _
    $region6: #{tpu_custom_call.1} parent=1 // loop_footer
      %s21 = sadd.s32 1, %s17
    $region7: #{tpu_custom_call.1} parent=1 // loop_footer_branch
      %16 = sbr.rel target = $region3
    $region8: #{tpu_custom_call.1} parent=1 // loop_exit
      _
    %845 = vsyncpa [#allocation3], 1
    %s846 = scalar_lea.sflag [#allocation3], 1
    %847 = vsyncpa %s846, 1
    %848 = vsyncpa [#allocation6], 1
    %849 = vsyncpa [#allocation4], 1
    %s850 = scalar_lea.sflag [#allocation4], 1
    %851 = vsyncpa %s850, 1

</llo_original>
